<compile_context>
chip_gen: v5e
topology: v5e:2x2
jax: 0.10.0
libtpu: 0.0.40
codegen_flags: <defaults>
</compile_context>

<pallas_src>
import math
import functools

import jax
import jax.numpy as jnp
from jax.experimental import pallas as pl
from jax.experimental.pallas import tpu as pltpu


def _relu6(x):
    return jnp.minimum(jnp.maximum(x, 0.0), 6.0)


# ----------------------------------------------------------------------------
# Kernel: one (batch, H-tile) step of the stride-2 3x3 transposed conv.
# ----------------------------------------------------------------------------
def _upsample_kernel(xm_ref, xh_ref, we_ref, wo_ref, b_ref, o_ref):
    """
    xm_ref: (1, TH, W+1, Cin)   bf16  input rows of this tile (incl. right halo col)
    xh_ref: (1, 1,  W+1, Cin)   bf16  first input row of the next tile (bottom halo)
    we_ref: (2*Cin, 2*Cp)       bf16  weights for even output rows  [even col | odd col]
    wo_ref: (4*Cin, 2*Cp)       bf16  weights for odd  output rows  [even col | odd col]
    b_ref : (1, 2*Cp)           f32   folded BN bias, duplicated per column phase
    o_ref : (1, TH, 2, W, 2*Cp)       output; reshape to (N, 2H, 2W, Cp) outside is free
    """
    th = xm_ref.shape[1]
    w = xm_ref.shape[2] - 1
    cin = xm_ref.shape[3]
    m = th * w

    x_main = xm_ref[0]                                          # (TH, W+1, Cin)
    x_halo = xh_ref[0]                                          # (1,  W+1, Cin)
    if th == 1:
        x_down = x_halo                                         # rows shifted by +1
    else:
        x_down = jnp.concatenate([x_main[1:], x_halo], axis=0)  # (TH, W+1, Cin)

    # The four shifted views feeding the four output phases.
    x00 = x_main[:, :w, :].reshape(m, cin)
    x01 = x_main[:, 1:, :].reshape(m, cin)
    x10 = x_down[:, :w, :].reshape(m, cin)
    x11 = x_down[:, 1:, :].reshape(m, cin)

    x_even = jnp.concatenate([x00, x01], axis=-1)               # (M, 2*Cin)
    x_all = jnp.concatenate([x_even, x10, x11], axis=-1)        # (M, 4*Cin)

    bias = b_ref[...]                                           # (1, 2*Cp) f32
    y_even = jnp.dot(x_even, we_ref[...], preferred_element_type=jnp.float32)
    y_odd = jnp.dot(x_all, wo_ref[...], preferred_element_type=jnp.float32)
    y_even = _relu6(y_even + bias)
    y_odd = _relu6(y_odd + bias)

    two_cp = o_ref.shape[-1]
    o_ref[0, :, 0, :, :] = y_even.reshape(th, w, two_cp).astype(o_ref.dtype)
    o_ref[0, :, 1, :, :] = y_odd.reshape(th, w, two_cp).astype(o_ref.dtype)


# ----------------------------------------------------------------------------
# Parameter folding / packing (done once, outside the hot path).
# ----------------------------------------------------------------------------
def fold_bn_into_deconv(weight, conv_bias, gamma, beta, running_mean,
                        running_var, eps=1e-5):
    """Fold eval-mode BatchNorm into the ConvTranspose2d weight/bias.

    weight: (Cin, Cout, 3, 3)  -- PyTorch ConvTranspose2d layout.
    Returns bf16-rounded folded weight (as used by the kernel) and f32 bias.
    """
    scale = gamma / jnp.sqrt(running_var + eps)                           # (Cout,)
    w_f = (weight * scale[None, :, None, None]).astype(jnp.bfloat16)
    b_f = (beta + (conv_bias - running_mean) * scale).astype(jnp.float32)
    return w_f, b_f


def pack_deconv_params(w_folded, b_folded):
    """Rearrange the folded 3x3 transposed-conv weight into the two phase
    matmul matrices the kernel consumes.  Cout is padded to a multiple of 64
    so the kernel's stored last dim (2*Cp) is a multiple of 128 (lane dense)."""
    cin, cout = w_folded.shape[0], w_folded.shape[1]
    cp = ((cout + 63) // 64) * 64
    w = w_folded.astype(jnp.float32)
    b = b_folded
    if cp != cout:
        w = jnp.pad(w, ((0, 0), (0, cp - cout), (0, 0), (0, 0)))
        b = jnp.pad(b, (0, cp - cout))

    tap = lambda kh, kw: w[:, :, kh, kw]                                  # (Cin, Cp)
    zero = jnp.zeros((cin, cp), jnp.float32)

    # Even output rows (2i): only kernel row 1 contributes (from input row i).
    #   column blocks: [even output col | odd output col]
    w_even = jnp.concatenate([
        jnp.concatenate([tap(1, 1), tap(1, 2)], axis=1),    # from x[i, j]
        jnp.concatenate([zero,      tap(1, 0)], axis=1),    # from x[i, j+1]
    ], axis=0)                                              # (2*Cin, 2*Cp)

    # Odd output rows (2i+1): kernel row 2 (from row i) and row 0 (from row i+1).
    w_odd = jnp.concatenate([
        jnp.concatenate([tap(2, 1), tap(2, 2)], axis=1),    # from x[i,   j]
        jnp.concatenate([zero,      tap(2, 0)], axis=1),    # from x[i,   j+1]
        jnp.concatenate([tap(0, 1), tap(0, 2)], axis=1),    # from x[i+1, j]
        jnp.concatenate([zero,      tap(0, 0)], axis=1),    # from x[i+1, j+1]
    ], axis=0)                                              # (4*Cin, 2*Cp)

    bias2 = jnp.concatenate([b, b])[None, :].astype(jnp.float32)          # (1, 2*Cp)
    return (w_even.astype(jnp.bfloat16), w_odd.astype(jnp.bfloat16), bias2)


# ----------------------------------------------------------------------------
# Host wrapper.
# ----------------------------------------------------------------------------
def _pick_tile_h(h, w, tile_h=None, target_rows=512):
    """H-tile so each grid step feeds ~target_rows (TH*W) matmul rows
    (512-row tiles ~ HBM-roofline sweet spot) while dividing H exactly and
    keeping per-step VMEM bounded (v7x: 64 MiB physical)."""
    if tile_h is None:
        tile_h = max(1, target_rows // max(1, w))
    tile_h = int(max(1, min(h, tile_h)))
    while h % tile_h:
        tile_h -= 1
    return tile_h


def upsample_forward(x_nchw, w_even, w_odd, bias2, *, cout, output_size,
                     tile_h=None, out_dtype=jnp.float32):
    """ConvTranspose2d(Cin->Cout, 3, stride=2, padding=1) + folded BN + ReLU6.

    x_nchw: (N, Cin, H, W).  output_size: like PyTorch's `output_size=`
    argument (last two entries are the spatial size; it fixes output_padding
    in {0, 1} per dim).  Returns (N, Cout, Hout, Wout).
    """
    n, cin, h, w = x_nchw.shape
    hout, wout = int(output_size[-2]), int(output_size[-1])
    oph, opw = hout - (2 * h - 1), wout - (2 * w - 1)
    if not (0 <= oph <= 1 and 0 <= opw <= 1):
        raise ValueError("output_size incompatible with stride-2/pad-1/k=3 deconv")
    if w_even.shape[0] != 2 * cin or w_odd.shape[0] != 4 * cin:
        raise ValueError("packed weights do not match input channel count")

    two_cp = w_even.shape[1]
    cp = two_cp // 2

    tile_h_v = _pick_tile_h(h, w, tile_h)
    n_h = h // tile_h_v

    # NCHW -> NHWC (channels on lanes), bf16, and a single +1 zero row/col on
    # the bottom/right -- the only halo this transposed conv needs.
    x_nhwc = jnp.transpose(x_nchw, (0, 2, 3, 1)).astype(jnp.bfloat16)
    xp = jnp.pad(x_nhwc, ((0, 0), (0, 1), (0, 1), (0, 0)))     # (N, H+1, W+1, Cin)

    out6 = pl.pallas_call(
        _upsample_kernel,
        grid=(n, n_h),
        in_specs=[
            # main tile: input rows [i*TH, i*TH+TH)
            pl.BlockSpec((1, tile_h_v, w + 1, cin), lambda b, i: (b, i, 0, 0)),
            # bottom halo: single row i*TH+TH (row H is the zero pad row)
            pl.BlockSpec((1, 1, w + 1, cin),
                         lambda b, i: (b, (i + 1) * tile_h_v, 0, 0)),
            pl.BlockSpec((2 * cin, two_cp), lambda b, i: (0, 0)),
            pl.BlockSpec((4 * cin, two_cp), lambda b, i: (0, 0)),
            pl.BlockSpec((1, two_cp), lambda b, i: (0, 0)),
        ],
        out_specs=pl.BlockSpec((1, tile_h_v, 2, w, two_cp),
                               lambda b, i: (b, i, 0, 0, 0)),
        out_shape=jax.ShapeDtypeStruct((n, h, 2, w, two_cp), out_dtype),
        compiler_params=pltpu.CompilerParams(
            dimension_semantics=("parallel", "parallel"),
            vmem_limit_bytes=32 * 1024 * 1024),
    )(xp, xp, w_even, w_odd, bias2)

    # (N, H, 2, W, 2*Cp) -> (N, 2H, 2W, Cp): pure row-major reshape (free).
    out = out6.reshape(n, 2 * h, 2 * w, cp)
    if hout != 2 * h or wout != 2 * w or cp != cout:
        out = out[:, :hout, :wout, :cout]
    return jnp.transpose(out, (0, 3, 1, 2))                     # back to NCHW


# ----------------------------------------------------------------------------
# Pure-JAX reference (transposed conv expressed as an input-dilated conv).
# ----------------------------------------------------------------------------
def upsample_reference(x_nchw, w_folded, b_folded, output_size):
    n, cin, h, w = x_nchw.shape
    hout, wout = int(output_size[-2]), int(output_size[-1])
    oph, opw = hout - (2 * h - 1), wout - (2 * w - 1)
    rhs = jnp.transpose(w_folded.astype(jnp.float32), (1, 0, 2, 3))[:, :, ::-1, ::-1]
    y = jax.lax.conv_general_dilated(
        x_nchw.astype(jnp.float32), rhs,
        window_strides=(1, 1),
        padding=((1, 1 + oph), (1, 1 + opw)),
        lhs_dilation=(2, 2),
        dimension_numbers=("NCHW", "OIHW", "NCHW"),
        precision=jax.lax.Precision.HIGHEST)
    y = y + b_folded[None, :, None, None]
    return jnp.clip(y, 0.0, 6.0)


if __name__ == "__main__":
    key = jax.random.PRNGKey(0)
    n, cin, cout, h, w = 2, 32, 64, 16, 16
    output_size = (2 * h, 2 * w)          # PyTorch output_size -> output_padding = 1

    ks = jax.random.split(key, 7)
    x = jax.random.normal(ks[0], (n, cin, h, w), dtype=jnp.float32)
    weight = jax.random.normal(ks[1], (cin, cout, 3, 3), jnp.float32) / math.sqrt(cin * 9)
    conv_bias = 0.05 * jax.random.normal(ks[2], (cout,), jnp.float32)
    gamma = jax.random.uniform(ks[3], (cout,), minval=0.5, maxval=1.5)
    beta = 0.1 * jax.random.normal(ks[4], (cout,), jnp.float32)
    running_mean = 0.1 * jax.random.normal(ks[5], (cout,), jnp.float32)
    running_var = jax.random.uniform(ks[6], (cout,), minval=0.5, maxval=1.5)

    w_folded, b_folded = fold_bn_into_deconv(weight, conv_bias, gamma, beta,
                                             running_mean, running_var)
    w_even, w_odd, bias2 = pack_deconv_params(w_folded, b_folded)

    fwd = jax.jit(functools.partial(upsample_forward, cout=cout,
                                    output_size=output_size, tile_h=8))
    out = jax.block_until_ready(fwd(x, w_even, w_odd, bias2))
    assert out.shape == (n, cout, 2 * h, 2 * w), out.shape
    assert bool(jnp.all(jnp.isfinite(out)))

    # Compare against the pure-JAX reference on the same bf16-rounded operands.
    x_q = x.astype(jnp.bfloat16).astype(jnp.float32)
    ref = upsample_reference(x_q, w_folded, b_folded, output_size)
    err = float(jnp.max(jnp.abs(out.astype(jnp.float32) - ref)))
    assert err < 2e-3, f"max abs error vs reference: {err}"
    print("KERNEL_OK")
</pallas_src>

<mosaic_0001>
module attributes {stable_mosaic.version = 11 : i64} {
  func.func @_upsample_kernel(%arg0: i32, %arg1: i32, %arg2: memref<1x8x17x32xbf16, #tpu.memory_space<vmem>>, %arg3: memref<1x1x17x32xbf16, #tpu.memory_space<vmem>>, %arg4: memref<64x128xbf16, #tpu.memory_space<vmem>>, %arg5: memref<128x128xbf16, #tpu.memory_space<vmem>>, %arg6: memref<1x128xf32, #tpu.memory_space<vmem>>, %arg7: memref<1x8x2x16x128xf32, #tpu.memory_space<vmem>>) attributes {dimension_semantics = [#tpu.dimension_semantics<parallel>, #tpu.dimension_semantics<parallel>], iteration_bounds = array<i64: 2, 2>, scalar_prefetch = 0 : i64, scratch_operands = 0 : i64, tpu.core_type = #tpu.core_type<tc>, window_params = [{transform_indices = @transform_0, window_bounds = array<i64: 1, 8, 17, 32>}, {transform_indices = @transform_1, window_bounds = array<i64: 1, 1, 17, 32>}, {pipeline_mode = #tpu.pipeline_mode<synchronous>, transform_indices = @transform_2, window_bounds = array<i64: 64, 128>}, {pipeline_mode = #tpu.pipeline_mode<synchronous>, transform_indices = @transform_3, window_bounds = array<i64: 128, 128>}, {pipeline_mode = #tpu.pipeline_mode<synchronous>, transform_indices = @transform_4, window_bounds = array<i64: 1, 128>}, {transform_indices = @transform_5, window_bounds = array<i64: 1, 8, 2, 16, 128>}]} {
    %c0 = arith.constant 0 : index
    %c0_0 = arith.constant 0 : index
    %c0_1 = arith.constant 0 : index
    %c0_2 = arith.constant 0 : index
    %0 = vector.load %arg2[%c0, %c0_0, %c0_1, %c0_2] : memref<1x8x17x32xbf16, #tpu.memory_space<vmem>>, vector<1x8x17x32xbf16>
    %1 = vector.shape_cast %0 : vector<1x8x17x32xbf16> to vector<8x17x32xbf16>
    %c0_3 = arith.constant 0 : index
    %c0_4 = arith.constant 0 : index
    %c0_5 = arith.constant 0 : index
    %c0_6 = arith.constant 0 : index
    %2 = vector.load %arg3[%c0_3, %c0_4, %c0_5, %c0_6] : memref<1x1x17x32xbf16, #tpu.memory_space<vmem>>, vector<1x1x17x32xbf16>
    %3 = vector.shape_cast %2 : vector<1x1x17x32xbf16> to vector<1x17x32xbf16>
    %4 = vector.extract_strided_slice %1 {offsets = [1, 0, 0], sizes = [7, 17, 32], strides = [1, 1, 1]} : vector<8x17x32xbf16> to vector<7x17x32xbf16>
    %5 = tpu.concatenate %4, %3 in 0 : vector<7x17x32xbf16>, vector<1x17x32xbf16> -> vector<8x17x32xbf16>
    %6 = vector.extract_strided_slice %1 {offsets = [0, 0, 0], sizes = [8, 16, 32], strides = [1, 1, 1]} : vector<8x17x32xbf16> to vector<8x16x32xbf16>
    %7 = vector.shape_cast %6 : vector<8x16x32xbf16> to vector<128x32xbf16>
    %8 = vector.extract_strided_slice %1 {offsets = [0, 1, 0], sizes = [8, 16, 32], strides = [1, 1, 1]} : vector<8x17x32xbf16> to vector<8x16x32xbf16>
    %9 = vector.shape_cast %8 : vector<8x16x32xbf16> to vector<128x32xbf16>
    %10 = vector.extract_strided_slice %5 {offsets = [0, 0, 0], sizes = [8, 16, 32], strides = [1, 1, 1]} : vector<8x17x32xbf16> to vector<8x16x32xbf16>
    %11 = vector.shape_cast %10 : vector<8x16x32xbf16> to vector<128x32xbf16>
    %12 = vector.extract_strided_slice %5 {offsets = [0, 1, 0], sizes = [8, 16, 32], strides = [1, 1, 1]} : vector<8x17x32xbf16> to vector<8x16x32xbf16>
    %13 = vector.shape_cast %12 : vector<8x16x32xbf16> to vector<128x32xbf16>
    %14 = tpu.concatenate %7, %9 in 1 : vector<128x32xbf16>, vector<128x32xbf16> -> vector<128x64xbf16>
    %15 = tpu.concatenate %14, %11, %13 in 1 : vector<128x64xbf16>, vector<128x32xbf16>, vector<128x32xbf16> -> vector<128x128xbf16>
    %c0_7 = arith.constant 0 : index
    %c0_8 = arith.constant 0 : index
    %16 = vector.load %arg6[%c0_7, %c0_8] : memref<1x128xf32, #tpu.memory_space<vmem>>, vector<1x128xf32>
    %c0_9 = arith.constant 0 : index
    %c0_10 = arith.constant 0 : index
    %17 = vector.load %arg4[%c0_9, %c0_10] : memref<64x128xbf16, #tpu.memory_space<vmem>>, vector<64x128xbf16>
    %cst = arith.constant dense<0.000000e+00> : vector<128x128xf32>
    %18 = tpu.matmul %14, %17, %cst {dimension_numbers = #tpu.dot_dimension_numbers<[1], [0], [0], [1], [0, 0, 1, 1], [], []>} : vector<128x64xbf16>, vector<64x128xbf16>, vector<128x128xf32> -> vector<128x128xf32>
    %c0_11 = arith.constant 0 : index
    %c0_12 = arith.constant 0 : index
    %19 = vector.load %arg5[%c0_11, %c0_12] : memref<128x128xbf16, #tpu.memory_space<vmem>>, vector<128x128xbf16>
    %cst_13 = arith.constant dense<0.000000e+00> : vector<128x128xf32>
    %20 = tpu.matmul %15, %19, %cst_13 {dimension_numbers = #tpu.dot_dimension_numbers<[1], [0], [0], [1], [0, 0, 1, 1], [], []>} : vector<128x128xbf16>, vector<128x128xbf16>, vector<128x128xf32> -> vector<128x128xf32>
    %21 = vector.broadcast %16 : vector<1x128xf32> to vector<128x128xf32>
    %22 = arith.addf %18, %21 : vector<128x128xf32>
    %cst_14 = arith.constant 0.000000e+00 : f32
    %23 = vector.broadcast %cst_14 : f32 to vector<128x128xf32>
    %24 = arith.maximumf %22, %23 : vector<128x128xf32>
    %cst_15 = arith.constant 6.000000e+00 : f32
    %25 = vector.broadcast %cst_15 : f32 to vector<128x128xf32>
    %26 = arith.minimumf %24, %25 : vector<128x128xf32>
    %27 = vector.broadcast %16 : vector<1x128xf32> to vector<128x128xf32>
    %28 = arith.addf %20, %27 : vector<128x128xf32>
    %cst_16 = arith.constant 0.000000e+00 : f32
    %29 = vector.broadcast %cst_16 : f32 to vector<128x128xf32>
    %30 = arith.maximumf %28, %29 : vector<128x128xf32>
    %cst_17 = arith.constant 6.000000e+00 : f32
    %31 = vector.broadcast %cst_17 : f32 to vector<128x128xf32>
    %32 = arith.minimumf %30, %31 : vector<128x128xf32>
    %33 = vector.shape_cast %26 : vector<128x128xf32> to vector<8x16x128xf32>
    %c0_18 = arith.constant 0 : index
    %c0_19 = arith.constant 0 : index
    %c0_20 = arith.constant 0 : index
    %c0_21 = arith.constant 0 : index
    %c0_22 = arith.constant 0 : index
    %34 = vector.load %arg7[%c0_18, %c0_19, %c0_20, %c0_21, %c0_22] : memref<1x8x2x16x128xf32, #tpu.memory_space<vmem>>, vector<1x8x1x16x128xf32>
    %35 = vector.shape_cast %34 : vector<1x8x1x16x128xf32> to vector<8x16x128xf32>
    %36 = vector.shape_cast %33 : vector<8x16x128xf32> to vector<1x8x1x16x128xf32>
    tpu.vector_store %arg7[%c0_18, %c0_19, %c0_20, %c0_21, %c0_22], %36 {strides = array<i32>} : memref<1x8x2x16x128xf32, #tpu.memory_space<vmem>>, vector<1x8x1x16x128xf32>,
    %37 = vector.shape_cast %32 : vector<128x128xf32> to vector<8x16x128xf32>
    %c0_23 = arith.constant 0 : index
    %c0_24 = arith.constant 0 : index
    %c1 = arith.constant 1 : index
    %c0_25 = arith.constant 0 : index
    %c0_26 = arith.constant 0 : index
    %38 = vector.load %arg7[%c0_23, %c0_24, %c1, %c0_25, %c0_26] : memref<1x8x2x16x128xf32, #tpu.memory_space<vmem>>, vector<1x8x1x16x128xf32>
    %39 = vector.shape_cast %38 : vector<1x8x1x16x128xf32> to vector<8x16x128xf32>
    %40 = vector.shape_cast %37 : vector<8x16x128xf32> to vector<1x8x1x16x128xf32>
    tpu.vector_store %arg7[%c0_23, %c0_24, %c1, %c0_25, %c0_26], %40 {strides = array<i32>} : memref<1x8x2x16x128xf32, #tpu.memory_space<vmem>>, vector<1x8x1x16x128xf32>,
    return
  }
  func.func @transform_0(%arg0: i32, %arg1: i32) -> (i32, i32, i32, i32) {
    %c0_i32 = arith.constant 0 : i32
    %c0_i32_0 = arith.constant 0 : i32
    %c0_i32_1 = arith.constant 0 : i32
    return %arg0, %arg1, %c0_i32, %c0_i32_0 : i32, i32, i32, i32
  }
  func.func @transform_1(%arg0: i32, %arg1: i32) -> (i32, i32, i32, i32) {
    %c1_i32 = arith.constant 1 : i32
    %0 = arith.addi %arg1, %c1_i32 : i32
    %c8_i32 = arith.constant 8 : i32
    %1 = arith.muli %0, %c8_i32 : i32
    %c0_i32 = arith.constant 0 : i32
    %c0_i32_0 = arith.constant 0 : i32
    %c0_i32_1 = arith.constant 0 : i32
    return %arg0, %1, %c0_i32, %c0_i32_0 : i32, i32, i32, i32
  }
  func.func @transform_2(%arg0: i32, %arg1: i32) -> (i32, i32) {
    %c0_i32 = arith.constant 0 : i32
    %c0_i32_0 = arith.constant 0 : i32
    %c0_i32_1 = arith.constant 0 : i32
    return %c0_i32, %c0_i32_0 : i32, i32
  }
  func.func @transform_3(%arg0: i32, %arg1: i32) -> (i32, i32) {
    %c0_i32 = arith.constant 0 : i32
    %c0_i32_0 = arith.constant 0 : i32
    %c0_i32_1 = arith.constant 0 : i32
    return %c0_i32, %c0_i32_0 : i32, i32
  }
  func.func @transform_4(%arg0: i32, %arg1: i32) -> (i32, i32) {
    %c0_i32 = arith.constant 0 : i32
    %c0_i32_0 = arith.constant 0 : i32
    %c0_i32_1 = arith.constant 0 : i32
    return %c0_i32, %c0_i32_0 : i32, i32
  }
  func.func @transform_5(%arg0: i32, %arg1: i32) -> (i32, i32, i32, i32, i32) {
    %c0_i32 = arith.constant 0 : i32
    %c0_i32_0 = arith.constant 0 : i32
    %c0_i32_1 = arith.constant 0 : i32
    %c0_i32_2 = arith.constant 0 : i32
    return %arg0, %arg1, %c0_i32, %c0_i32_0, %c0_i32_1 : i32, i32, i32, i32, i32
  }
}

</mosaic_0001>

<llo_original>
// kernel: upsample_forward.1
$region0: #{upsample_forward.1}
  #allocation0 [shape = 'u32[]', space=smem, size = 0x4, offset = 0x4, fixed_abs, tag = 'smem constant byte address 0x4 - core index']
  #allocation1 [shape = 'u32[72,128]{1,0:T(1,128)}', space=vmem, size = 0x9000, scoped, tag = 'internal scratch']
  %s0 = inlined_call_operand.vmem [shape: bf16[2,17,17,32], index: 0, kind: input, shape index: {}, may-alias: {0,1}]
  %s1 = inlined_call_operand.vmem [shape: bf16[2,17,17,32], index: 1, kind: input, shape index: {}, may-alias: {0,1}]
  %s2 = inlined_call_operand.vmem [shape: bf16[64,128], index: 2, kind: input, shape index: {}]
  %s3 = inlined_call_operand.vmem [shape: bf16[128,128], index: 3, kind: input, shape index: {}]
  %s4 = inlined_call_operand.vmem [shape: f32[1,128], index: 4, kind: input, shape index: {}]
  %s5 = inlined_call_operand.vmem [shape: f32[2,16,2,16,128], index: 5, kind: output, shape index: {}]
  %s6 = sld [smem:[#allocation0]]
  $region53: #{upsample_forward.1} parent=0
    _
  %s8 = ssub.s32 1, %s6
  %s9 = scalar_select 0, %s8, %s6
  loop: start=0, step=1, limit=6
  $region2: #{upsample_forward.1} parent=0 // loop_pre_header
    _
  $region3: #{upsample_forward.1} parent=0 // loop_header
    %s11 = sphi 0, %s15
    %p12 = scmp.ge.s32.totalorder %s11, 6
    %s18 = sphi 0, %s30
    %s19 = sphi 0, %s26
    %s20 = sphi 0, %s18
    %s21 = sphi 0, %s19
    %s22 = sphi 0, %s20
    %s23 = sphi 0, %s21
    %s35 = sphi 0, %s37
    %s38 = sphi 0, %s35
    %s39 = sphi 0, %s38
    %s55 = sphi 0, %s39
    %s67 = sphi 0, %s69
    %s70 = sphi 0, %s67
    %s71 = sphi 0, %s70
    %s87 = sphi 0, %s71
    %s91 = sphi 0, %s91
    %s93 = sphi 0, %s91
    %s94 = sphi 0, %s93
    %s108 = sphi 0, %s94
    %s112 = sphi 0, %s112
    %s114 = sphi 0, %s112
    %s115 = sphi 0, %s114
    %s129 = sphi 0, %s115
    %s133 = sphi 0, %s133
    %s135 = sphi 0, %s133
    %s136 = sphi 0, %s135
    %s150 = sphi 0, %s136
    %s158 = sphi 0, %s160
    %s161 = sphi 0, %s158
    %s162 = sphi 0, %s161
    %s178 = sphi 0, %s162
  $region4: #{upsample_forward.1} parent=0 // loop_header_branch
    %14 = sbr.rel (%p12) target = $region8
  $region5: #{upsample_forward.1} parent=0 // loop_body
    %s16 = ssub.s32 %s11, 1
    %s17 = ssub.s32 %s11, 2
    %s24 = sadd.s32 1, %s19
    %p25 = scmp.ge.s32.totalorder %s24, 2
    %s26 = scalar_select %p25, 0, %s24
    %s27 = sadd.s32 1, %s18
    %s28 = scalar_select %p25, %s27, %s18
    %p29 = scmp.ge.s32.totalorder %s28, 2
    %s30 = scalar_select %p29, 0, %s28
    %s31 = ssub.s32 %s18, %s30
    %s32 = ssub.s32 %s19, %s26
    %s33 = sor.u32 %s31, %s32
    %p34 = scmp.eq.s32.totalorder %s33, 0
    %s36 = sadd.s32 %s35, 1
    %s37 = scalar_select %p34, %s35, %s36
    %p40 = pneg %p34
    %p41 = scmp.eq.s32.totalorder %s11, 3
    %p42 = por %p40, %p41
    %p43 = scmp.ne.s32.totalorder %s35, %s38
    %p44 = scmp.eq.s32.totalorder %s11, 0
    %p45 = por %p43, %p44
    %p46 = scmp.ne.s32.totalorder %s35, %s38
    %p47 = scmp.eq.s32.totalorder %s16, 3
    %p48 = por %p46, %p47
    %p49 = scmp.ne.s32.totalorder %s38, %s39
    %p50 = scmp.eq.s32.totalorder %s16, 0
    %p51 = por %p49, %p50
    %p52 = scmp.ne.s32.totalorder %s38, %s39
    %p53 = scmp.eq.s32.totalorder %s17, 3
    %p54 = por %p52, %p53
    %p56 = scmp.ne.s32.totalorder %s39, %s55
    %p57 = scmp.eq.s32.totalorder %s17, 0
    %p58 = por %p56, %p57
    %s59 = sadd.s32 %s19, 1
    %s60 = smul.u32 %s59, 8
    %s61 = sadd.s32 %s26, 1
    %s62 = smul.u32 %s61, 8
    %s63 = ssub.s32 %s18, %s30
    %s64 = ssub.s32 %s60, %s62
    %s65 = sor.u32 %s63, %s64
    %p66 = scmp.eq.s32.totalorder %s65, 0
    %s68 = sadd.s32 %s67, 1
    %s69 = scalar_select %p66, %s67, %s68
    %p72 = pneg %p66
    %p73 = scmp.eq.s32.totalorder %s11, 3
    %p74 = por %p72, %p73
    %p75 = scmp.ne.s32.totalorder %s67, %s70
    %p76 = scmp.eq.s32.totalorder %s11, 0
    %p77 = por %p75, %p76
    %p78 = scmp.ne.s32.totalorder %s67, %s70
    %p79 = scmp.eq.s32.totalorder %s16, 3
    %p80 = por %p78, %p79
    %p81 = scmp.ne.s32.totalorder %s70, %s71
    %p82 = scmp.eq.s32.totalorder %s16, 0
    %p83 = por %p81, %p82
    %p84 = scmp.ne.s32.totalorder %s70, %s71
    %p85 = scmp.eq.s32.totalorder %s17, 3
    %p86 = por %p84, %p85
    %p88 = scmp.ne.s32.totalorder %s71, %s87
    %p89 = scmp.eq.s32.totalorder %s17, 0
    %p90 = por %p88, %p89
    %s92 = sadd.s32 %s91, 1
    %p95 = scmp.eq.s32.totalorder %s11, 3
    %p96 = scmp.ne.s32.totalorder %s91, %s93
    %p97 = scmp.eq.s32.totalorder %s11, 0
    %p98 = por %p96, %p97
    %p99 = scmp.ne.s32.totalorder %s91, %s93
    %p100 = scmp.eq.s32.totalorder %s16, 3
    %p101 = por %p99, %p100
    %p102 = scmp.ne.s32.totalorder %s93, %s94
    %p103 = scmp.eq.s32.totalorder %s16, 0
    %p104 = por %p102, %p103
    %p105 = scmp.ne.s32.totalorder %s93, %s94
    %p106 = scmp.eq.s32.totalorder %s17, 3
    %p107 = por %p105, %p106
    %p109 = scmp.ne.s32.totalorder %s94, %s108
    %p110 = scmp.eq.s32.totalorder %s17, 0
    %p111 = por %p109, %p110
    %s113 = sadd.s32 %s112, 1
    %p116 = scmp.eq.s32.totalorder %s11, 3
    %p117 = scmp.ne.s32.totalorder %s112, %s114
    %p118 = scmp.eq.s32.totalorder %s11, 0
    %p119 = por %p117, %p118
    %p120 = scmp.ne.s32.totalorder %s112, %s114
    %p121 = scmp.eq.s32.totalorder %s16, 3
    %p122 = por %p120, %p121
    %p123 = scmp.ne.s32.totalorder %s114, %s115
    %p124 = scmp.eq.s32.totalorder %s16, 0
    %p125 = por %p123, %p124
    %p126 = scmp.ne.s32.totalorder %s114, %s115
    %p127 = scmp.eq.s32.totalorder %s17, 3
    %p128 = por %p126, %p127
    %p130 = scmp.ne.s32.totalorder %s115, %s129
    %p131 = scmp.eq.s32.totalorder %s17, 0
    %p132 = por %p130, %p131
    %s134 = sadd.s32 %s133, 1
    %p137 = scmp.eq.s32.totalorder %s11, 3
    %p138 = scmp.ne.s32.totalorder %s133, %s135
    %p139 = scmp.eq.s32.totalorder %s11, 0
    %p140 = por %p138, %p139
    %p141 = scmp.ne.s32.totalorder %s133, %s135
    %p142 = scmp.eq.s32.totalorder %s16, 3
    %p143 = por %p141, %p142
    %p144 = scmp.ne.s32.totalorder %s135, %s136
    %p145 = scmp.eq.s32.totalorder %s16, 0
    %p146 = por %p144, %p145
    %p147 = scmp.ne.s32.totalorder %s135, %s136
    %p148 = scmp.eq.s32.totalorder %s17, 3
    %p149 = por %p147, %p148
    %p151 = scmp.ne.s32.totalorder %s136, %s150
    %p152 = scmp.eq.s32.totalorder %s17, 0
    %p153 = por %p151, %p152
    %s154 = ssub.s32 %s18, %s30
    %s155 = ssub.s32 %s19, %s26
    %s156 = sor.u32 %s154, %s155
    %p157 = scmp.eq.s32.totalorder %s156, 0
    %s159 = sadd.s32 %s158, 1
    %s160 = scalar_select %p157, %s158, %s159
    %p163 = pneg %p157
    %p164 = scmp.eq.s32.totalorder %s11, 3
    %p165 = por %p163, %p164
    %p166 = scmp.ne.s32.totalorder %s158, %s161
    %p167 = scmp.eq.s32.totalorder %s11, 0
    %p168 = por %p166, %p167
    %p169 = scmp.ne.s32.totalorder %s158, %s161
    %p170 = scmp.eq.s32.totalorder %s16, 3
    %p171 = por %p169, %p170
    %p172 = scmp.ne.s32.totalorder %s161, %s162
    %p173 = scmp.eq.s32.totalorder %s16, 0
    %p174 = por %p172, %p173
    %p175 = scmp.ne.s32.totalorder %s161, %s162
    %p176 = scmp.eq.s32.totalorder %s17, 3
    %p177 = por %p175, %p176
    %p179 = scmp.ne.s32.totalorder %s162, %s178
    %p180 = scmp.eq.s32.totalorder %s17, 0
    %p181 = por %p179, %p180
    %p182 = scmp.le.s32.totalorder 1, %s11
    %p183 = scmp.lt.s32.totalorder %s11, 5
    %p184 = pnand %p182, %p183
    %p185 = pneg %p184
    // Predicated region
    $region9: #{upsample_forward.1} parent=5 // pred_check
      _
    $region10: #{upsample_forward.1} parent=5 // pred_check_branch
      %187 = sbr.rel (%p184) target = $region12
    $region11: #{upsample_forward.1} parent=5 // pred_region
      %s188 = ssub.s32 %s11, 1
      // Predicated region
      $region13: #{upsample_forward.1} parent=11 // pred_check
        %p189 = pneg %p104
      $region14: #{upsample_forward.1} parent=11 // pred_check_branch
        %191 = sbr.rel (%p189) target = $region16
      $region15: #{upsample_forward.1} parent=11 // pred_region
        _
      $region16: #{upsample_forward.1} parent=11 // pred_fallthru
        _
      // Predicated region
      $region17: #{upsample_forward.1} parent=11 // pred_check
        %p192 = pneg %p125
      $region18: #{upsample_forward.1} parent=11 // pred_check_branch
        %194 = sbr.rel (%p192) target = $region20
      $region19: #{upsample_forward.1} parent=11 // pred_region
        _
      $region20: #{upsample_forward.1} parent=11 // pred_fallthru
        _
      // Predicated region
      $region21: #{upsample_forward.1} parent=11 // pred_check
        %p195 = pneg %p146
      $region22: #{upsample_forward.1} parent=11 // pred_check_branch
        %197 = sbr.rel (%p195) target = $region24
      $region23: #{upsample_forward.1} parent=11 // pred_region
        _
      $region24: #{upsample_forward.1} parent=11 // pred_fallthru
        _
    $region12: #{upsample_forward.1} parent=5 // pred_fallthru
      _
    %p198 = scmp.lt.s32.totalorder %s11, 4
    // Predicated region
    $region25: #{upsample_forward.1} parent=5 // pred_check
      %p199 = pneg %p198
    $region26: #{upsample_forward.1} parent=5 // pred_check_branch
      %201 = sbr.rel (%p199) target = $region28
    $region27: #{upsample_forward.1} parent=5 // pred_region
      // Predicated region
      $region29: #{upsample_forward.1} parent=27 // pred_check
        %p202 = pneg %p45
      $region30: #{upsample_forward.1} parent=27 // pred_check_branch
        %204 = sbr.rel (%p202) target = $region32
      $region31: #{upsample_forward.1} parent=27 // pred_region
        %s205 = smul.u32 8, %s19
        %s206 = ssub.s32 17, %s205
        %p207 = scmp.lt.s32.totalorder %s206, 8
        %s208 = scalar_select %p207, %s206, 8
        %s209 = smul.u32 4, %s208
        %s210 = smul.u32 %s209, 3
        %p211 = scmp.lt.s32.totalorder %s18, 1
        %s212 = scalar_select %p211, %s18, 1
        %p213 = scmp.lt.s32.totalorder %s205, 16
        %s214 = scalar_select %p213, %s205, 16
        %s215 = smul.addr %s214, 3
        %s216 = smul.addr %s212, 51
        %s217 = sadd.s32 %s215, %s216
        %s218 = smul.addr %s217, 4
        %s219 = scalar_lea.vmem %s0, %s218
        %s220 = smul.u32 8, %s19
        %s221 = ssub.s32 17, %s220
        %p222 = scmp.lt.s32.totalorder %s221, 8
        %s223 = scalar_select %p222, %s221, 8
        %s224 = smul.u32 4, %s223
        %s225 = smul.u32 %s224, 3
      $region32: #{upsample_forward.1} parent=27 // pred_fallthru
        _
      // Predicated region
      $region33: #{upsample_forward.1} parent=27 // pred_check
        %p226 = pneg %p77
      $region34: #{upsample_forward.1} parent=27 // pred_check_branch
        %228 = sbr.rel (%p226) target = $region36
      $region35: #{upsample_forward.1} parent=27 // pred_region
        %s229 = sadd.s32 %s19, 1
        %s230 = smul.u32 %s229, 8
        %p231 = scmp.lt.s32.totalorder %s18, 1
        %s232 = scalar_select %p231, %s18, 1
        %p233 = scmp.lt.s32.totalorder %s230, 16
        %s234 = scalar_select %p233, %s230, 16
        %s235 = smul.addr %s234, 3
        %s236 = smul.addr %s232, 51
        %s237 = sadd.s32 %s235, %s236
        %s238 = smul.addr %s237, 4
        %s239 = scalar_lea.vmem %s1, %s238
        %s240 = sadd.s32 %s19, 1
        %s241 = smul.u32 %s240, 8
      $region36: #{upsample_forward.1} parent=27 // pred_fallthru
        _
    $region28: #{upsample_forward.1} parent=5 // pred_fallthru
      _
    %p242 = scmp.le.s32.totalorder 1, %s11
    %p243 = scmp.lt.s32.totalorder %s11, 5
    %p244 = pnand %p242, %p243
    %p245 = pneg %p244
    // Predicated region
    $region37: #{upsample_forward.1} parent=5 // pred_check
      _
    $region38: #{upsample_forward.1} parent=5 // pred_check_branch
      %247 = sbr.rel (%p244) target = $region40
    $region39: #{upsample_forward.1} parent=5 // pred_region
      %s248 = ssub.s32 %s11, 1
      %s249 = smul.u32 8, %s21
      %s250 = ssub.s32 17, %s249
      %p251 = scmp.lt.s32.totalorder %s250, 8
      %s252 = scalar_select %p251, %s250, 8
      %s253 = smul.u32 4, %s252
      %s254 = smul.u32 %s253, 3
      %p255 = scmp.lt.s32.totalorder %s20, 1
      %s256 = scalar_select %p255, %s20, 1
      %p257 = scmp.lt.s32.totalorder %s249, 16
      %s258 = scalar_select %p257, %s249, 16
      %s259 = smul.addr %s258, 3
      %s260 = smul.addr %s256, 51
      %s261 = sadd.s32 %s259, %s260
      %s262 = smul.addr %s261, 4
      %s263 = scalar_lea.vmem %s0, %s262
      %p264 = pneg %p51
      %p265 = pneg %p48
      %s266 = sadd.s32 %s21, 1
      %s267 = smul.u32 %s266, 8
      %p268 = scmp.lt.s32.totalorder %s20, 1
      %s269 = scalar_select %p268, %s20, 1
      %p270 = scmp.lt.s32.totalorder %s267, 16
      %s271 = scalar_select %p270, %s267, 16
      %s272 = smul.addr %s271, 3
      %s273 = smul.addr %s269, 51
      %s274 = sadd.s32 %s272, %s273
      %s275 = smul.addr %s274, 4
      %s276 = scalar_lea.vmem %s1, %s275
      %p277 = pneg %p83
      %p278 = pneg %p80
      %p279 = pneg %p104
      %p280 = pneg %p101
      %p281 = pneg %p125
      %p282 = pneg %p122
      %p283 = pneg %p146
      %p284 = pneg %p143
      %p285 = pneg %p174
      %p286 = pneg %p171
      %s287 = smul.u32 8, %s21
      %p288 = scmp.lt.s32.totalorder %s20, 1
      %s289 = scalar_select %p288, %s20, 1
      %p290 = scmp.lt.s32.totalorder %s287, 15
      %s291 = scalar_select %p290, %s287, 15
      %s292 = smul.addr %s291, 4
      %s293 = smul.addr %s289, 64
      %s294 = sadd.s32 %s292, %s293
      %s295 = smul.addr %s294, 8
      %s296 = scalar_lea.vmem %s5, %s295
      %s297 = smul.u32 8, %s21
      %s298 = ssub.s32 17, %s297
      %p299 = scmp.lt.s32.totalorder %s298, 8
      %s300 = scalar_select %p299, %s298, 8
      %s301 = smul.u32 4, %s300
      %s302 = smul.u32 %s301, 3
      %p303 = scmp.lt.s32.totalorder %s20, 1
      %s304 = scalar_select %p303, %s20, 1
      %p305 = scmp.lt.s32.totalorder %s297, 16
      %s306 = scalar_select %p305, %s297, 16
      %s307 = smul.addr %s306, 3
      %s308 = smul.addr %s304, 51
      %s309 = sadd.s32 %s307, %s308
      %s310 = smul.addr %s309, 4
      %s311 = scalar_lea.vmem %s0, %s310
      %s312 = smul.u32 8, %s21
      %s313 = ssub.s32 17, %s312
      %p314 = scmp.lt.s32.totalorder %s313, 8
      %s315 = scalar_select %p314, %s313, 8
      %s316 = smul.u32 4, %s315
      %s317 = smul.u32 %s316, 3
      %s318 = sadd.s32 %s21, 1
      %s319 = smul.u32 %s318, 8
      %p320 = scmp.lt.s32.totalorder %s20, 1
      %s321 = scalar_select %p320, %s20, 1
      %p322 = scmp.lt.s32.totalorder %s319, 16
      %s323 = scalar_select %p322, %s319, 16
      %s324 = smul.addr %s323, 3
      %s325 = smul.addr %s321, 51
      %s326 = sadd.s32 %s324, %s325
      %s327 = smul.addr %s326, 4
      %s328 = scalar_lea.vmem %s1, %s327
      %s329 = sadd.s32 %s21, 1
      %s330 = smul.u32 %s329, 8
      %s331 = smul.u32 8, %s21
      %p332 = scmp.lt.s32.totalorder %s20, 1
      %s333 = scalar_select %p332, %s20, 1
      %p334 = scmp.lt.s32.totalorder %s331, 15
      %s335 = scalar_select %p334, %s331, 15
      %s336 = smul.addr %s335, 4
      %s337 = smul.addr %s333, 64
      %s338 = sadd.s32 %s336, %s337
      %s339 = smul.addr %s338, 8
      %s340 = scalar_lea.vmem %s5, %s339
      %s341 = smul.u32 8, %s21
      %v343 = vld [vmem:[%s311] sm:$0xf]
      %v344 = vld [vmem:[%s311 + $0x4] sm:$0xf]
      %v345 = vld [vmem:[%s311 + $0x8] sm:$0x1]
      %v346 = vld [vmem:[%s311 + $0xc] sm:$0xf]
      %v347 = vld [vmem:[%s311 + $0x10] sm:$0xf]
      %v348 = vld [vmem:[%s311 + $0x14] sm:$0x1]
      %v349 = vld [vmem:[%s311 + $0x18] sm:$0xf]
      %v350 = vld [vmem:[%s311 + $0x1c] sm:$0xf]
      %v351 = vld [vmem:[%s311 + $0x20] sm:$0x1]
      %v352 = vld [vmem:[%s311 + $0x24] sm:$0xf]
      %v353 = vld [vmem:[%s311 + $0x28] sm:$0xf]
      %v354 = vld [vmem:[%s311 + $0x2c] sm:$0x1]
      %v355 = vld [vmem:[%s311 + $0x30] sm:$0xf]
      %v356 = vld [vmem:[%s311 + $0x34] sm:$0xf]
      %v357 = vld [vmem:[%s311 + $0x38] sm:$0x1]
      %v358 = vld [vmem:[%s311 + $0x3c] sm:$0xf]
      %v359 = vld [vmem:[%s311 + $0x40] sm:$0xf]
      %v360 = vld [vmem:[%s311 + $0x44] sm:$0x1]
      %v361 = vld [vmem:[%s311 + $0x48] sm:$0xf]
      %v362 = vld [vmem:[%s311 + $0x4c] sm:$0xf]
      %v363 = vld [vmem:[%s311 + $0x50] sm:$0x1]
      %v364 = vld [vmem:[%s311 + $0x54] sm:$0xf]
      %v365 = vld [vmem:[%s311 + $0x58] sm:$0xf]
      %v366 = vld [vmem:[%s311 + $0x5c] sm:$0x1]
      %v367 = vld [vmem:[%s328] sm:$0xf]
      %v368 = vld [vmem:[%s328 + $0x4] sm:$0xf]
      %v369 = vld [vmem:[%s328 + $0x8] sm:$0x1]
      %vm370 = vsmask.f32 3328
      %vm371 = vsmask.f32 7440
      %vm372 = vmor %vm370, %vm371
      %v374 = vshrl.u32 %v343, 16
      %v376 = vrot.slane %v374, 4
      %v377 = vshll.u32 %v343, 16
      %v379 = vrot.slane %v377, 5
      %v380 = vor.u32 %v376, %v379
      %v381 = vrot.slane %v380, 4
      %v383 = vshll.u32 %v344, 16
      %v385 = vrot.slane %v383, 5
      %v386 = vsel %vm372, %v381, %v385
      %v387 = vshrl.u32 %v344, 16
      %v389 = vrot.slane %v387, 4
      %v390 = vor.u32 %v389, %v385
      %v391 = vrot.slane %v390, 4
      %v393 = vshll.u32 %v345, 16
      %v395 = vrot.slane %v393, 5
      %v396 = vsel %vm372, %v391, %v395
      %v398 = vshrl.u32 %v346, 16
      %v400 = vrot.slane %v398, 4
      %v401 = vshll.u32 %v346, 16
      %v403 = vrot.slane %v401, 5
      %v404 = vor.u32 %v400, %v403
      %v405 = vrot.slane %v404, 4
      %v407 = vshll.u32 %v347, 16
      %v409 = vrot.slane %v407, 5
      %v410 = vsel %vm372, %v405, %v409
      %v411 = vshrl.u32 %v347, 16
      %v413 = vrot.slane %v411, 4
      %v414 = vor.u32 %v413, %v409
      %v415 = vrot.slane %v414, 4
      %v417 = vshll.u32 %v348, 16
      %v419 = vrot.slane %v417, 5
      %v420 = vsel %vm372, %v415, %v419
      %v422 = vshrl.u32 %v349, 16
      %v424 = vrot.slane %v422, 4
      %v425 = vshll.u32 %v349, 16
      %v427 = vrot.slane %v425, 5
      %v428 = vor.u32 %v424, %v427
      %v429 = vrot.slane %v428, 4
      %v431 = vshll.u32 %v350, 16
      %v433 = vrot.slane %v431, 5
      %v434 = vsel %vm372, %v429, %v433
      %v435 = vshrl.u32 %v350, 16
      %v437 = vrot.slane %v435, 4
      %v438 = vor.u32 %v437, %v433
      %v439 = vrot.slane %v438, 4
      %v441 = vshll.u32 %v351, 16
      %v443 = vrot.slane %v441, 5
      %v444 = vsel %vm372, %v439, %v443
      %v446 = vshrl.u32 %v352, 16
      %v448 = vrot.slane %v446, 4
      %v449 = vshll.u32 %v352, 16
      %v451 = vrot.slane %v449, 5
      %v452 = vor.u32 %v448, %v451
      %v453 = vrot.slane %v452, 4
      %v455 = vshll.u32 %v353, 16
      %v457 = vrot.slane %v455, 5
      %v458 = vsel %vm372, %v453, %v457
      %v459 = vshrl.u32 %v353, 16
      %v461 = vrot.slane %v459, 4
      %v462 = vor.u32 %v461, %v457
      %v463 = vrot.slane %v462, 4
      %v465 = vshll.u32 %v354, 16
      %v467 = vrot.slane %v465, 5
      %v468 = vsel %vm372, %v463, %v467
      %v470 = vshrl.u32 %v355, 16
      %v472 = vrot.slane %v470, 4
      %v473 = vshll.u32 %v355, 16
      %v475 = vrot.slane %v473, 5
      %v476 = vor.u32 %v472, %v475
      %v477 = vrot.slane %v476, 4
      %v479 = vshll.u32 %v356, 16
      %v481 = vrot.slane %v479, 5
      %v482 = vsel %vm372, %v477, %v481
      %v483 = vshrl.u32 %v356, 16
      %v485 = vrot.slane %v483, 4
      %v486 = vor.u32 %v485, %v481
      %v487 = vrot.slane %v486, 4
      %v489 = vshll.u32 %v357, 16
      %v491 = vrot.slane %v489, 5
      %v492 = vsel %vm372, %v487, %v491
      %v494 = vshrl.u32 %v358, 16
      %v496 = vrot.slane %v494, 4
      %v497 = vshll.u32 %v358, 16
      %v499 = vrot.slane %v497, 5
      %v500 = vor.u32 %v496, %v499
      %v501 = vrot.slane %v500, 4
      %v503 = vshll.u32 %v359, 16
      %v505 = vrot.slane %v503, 5
      %v506 = vsel %vm372, %v501, %v505
      %v507 = vshrl.u32 %v359, 16
      %v509 = vrot.slane %v507, 4
      %v510 = vor.u32 %v509, %v505
      %v511 = vrot.slane %v510, 4
      %v513 = vshll.u32 %v360, 16
      %v515 = vrot.slane %v513, 5
      %v516 = vsel %vm372, %v511, %v515
      %v518 = vshrl.u32 %v361, 16
      %v520 = vrot.slane %v518, 4
      %v521 = vshll.u32 %v361, 16
      %v523 = vrot.slane %v521, 5
      %v524 = vor.u32 %v520, %v523
      %v525 = vrot.slane %v524, 4
      %v527 = vshll.u32 %v362, 16
      %v529 = vrot.slane %v527, 5
      %v530 = vsel %vm372, %v525, %v529
      %v531 = vshrl.u32 %v362, 16
      %v533 = vrot.slane %v531, 4
      %v534 = vor.u32 %v533, %v529
      %v535 = vrot.slane %v534, 4
      %v537 = vshll.u32 %v363, 16
      %v539 = vrot.slane %v537, 5
      %v540 = vsel %vm372, %v535, %v539
      %v542 = vshrl.u32 %v364, 16
      %v544 = vrot.slane %v542, 4
      %v545 = vshll.u32 %v364, 16
      %v547 = vrot.slane %v545, 5
      %v548 = vor.u32 %v544, %v547
      %v549 = vrot.slane %v548, 4
      %v551 = vshll.u32 %v365, 16
      %v553 = vrot.slane %v551, 5
      %v554 = vsel %vm372, %v549, %v553
      %v555 = vshrl.u32 %v365, 16
      %v557 = vrot.slane %v555, 4
      %v558 = vor.u32 %v557, %v553
      %v559 = vrot.slane %v558, 4
      %v561 = vshll.u32 %v366, 16
      %v563 = vrot.slane %v561, 5
      %v564 = vsel %vm372, %v559, %v563
      %v566 = vshrl.u32 %v367, 16
      %v568 = vrot.slane %v566, 4
      %v569 = vshll.u32 %v367, 16
      %v571 = vrot.slane %v569, 5
      %v572 = vor.u32 %v568, %v571
      %v573 = vrot.slane %v572, 4
      %v575 = vshll.u32 %v368, 16
      %v577 = vrot.slane %v575, 5
      %v578 = vsel %vm372, %v573, %v577
      %v579 = vshrl.u32 %v368, 16
      %v581 = vrot.slane %v579, 4
      %v582 = vor.u32 %v581, %v577
      %v583 = vrot.slane %v582, 4
      %v585 = vshll.u32 %v369, 16
      %v587 = vrot.slane %v585, 5
      %v588 = vsel %vm372, %v583, %v587
      %v605 = vunpack.c.l.b16 %v343
      %v606 = vunpack.c.l.b16 %v344
      %v607 = vunpack.c.l.b16 %v346
      %v608 = vunpack.c.l.b16 %v347
      %v609 = vunpack.c.l.b16 %v349
      %v610 = vunpack.c.l.b16 %v350
      %v611 = vunpack.c.l.b16 %v352
      %v612 = vunpack.c.l.b16 %v353
      %v613 = vunpack.c.l.b16 %v355
      %v614 = vunpack.c.l.b16 %v356
      %v615 = vunpack.c.l.b16 %v358
      %v616 = vunpack.c.l.b16 %v359
      %v617 = vunpack.c.l.b16 %v361
      %v618 = vunpack.c.l.b16 %v362
      %v619 = vunpack.c.l.b16 %v364
      %v620 = vunpack.c.l.b16 %v365
      %v621 = vpack.c.b16 %v606, %v605
      %v622 = vpack.c.b16 %v608, %v607
      %v623 = vpack.c.b16 %v610, %v609
      %v624 = vpack.c.b16 %v612, %v611
      %v625 = vpack.c.b16 %v614, %v613
      %v626 = vpack.c.b16 %v616, %v615
      %v627 = vpack.c.b16 %v618, %v617
      %v628 = vpack.c.b16 %v620, %v619
      %v629 = vunpack.c.l.b16 %v386
      %v630 = vunpack.c.l.b16 %v396
      %v631 = vunpack.c.l.b16 %v410
      %v632 = vunpack.c.l.b16 %v420
      %v633 = vunpack.c.l.b16 %v434
      %v634 = vunpack.c.l.b16 %v444
      %v635 = vunpack.c.l.b16 %v458
      %v636 = vunpack.c.l.b16 %v468
      %v637 = vunpack.c.l.b16 %v482
      %v638 = vunpack.c.l.b16 %v492
      %v639 = vunpack.c.l.b16 %v506
      %v640 = vunpack.c.l.b16 %v516
      %v641 = vunpack.c.l.b16 %v530
      %v642 = vunpack.c.l.b16 %v540
      %v643 = vunpack.c.l.b16 %v554
      %v644 = vunpack.c.l.b16 %v564
      %v645 = vpack.c.b16 %v630, %v629
      %v646 = vpack.c.b16 %v632, %v631
      %v647 = vpack.c.b16 %v634, %v633
      %v648 = vpack.c.b16 %v636, %v635
      %v649 = vpack.c.b16 %v638, %v637
      %v650 = vpack.c.b16 %v640, %v639
      %v651 = vpack.c.b16 %v642, %v641
      %v652 = vpack.c.b16 %v644, %v643
      %653 = vrot.lane.b32.xlu0 %v645, 32
      %v654 = vpop.permute.xlu0 %653
      %655 = vrot.lane.b32.xlu0 %v646, 32
      %v656 = vpop.permute.xlu0 %655
      %657 = vrot.lane.b32.xlu0 %v647, 32
      %v658 = vpop.permute.xlu0 %657
      %659 = vrot.lane.b32.xlu0 %v648, 32
      %v660 = vpop.permute.xlu0 %659
      %661 = vrot.lane.b32.xlu0 %v649, 32
      %v662 = vpop.permute.xlu0 %661
      %663 = vrot.lane.b32.xlu0 %v650, 32
      %v664 = vpop.permute.xlu0 %663
      %665 = vrot.lane.b32.xlu0 %v651, 32
      %v666 = vpop.permute.xlu0 %665
      %667 = vrot.lane.b32.xlu0 %v652, 32
      %v668 = vpop.permute.xlu0 %667
      %vm669 = vcmask 261120
      %v672 = vsel %vm669, %v621, %v654
      %v675 = vsel %vm669, %v622, %v656
      %v678 = vsel %vm669, %v623, %v658
      %v681 = vsel %vm669, %v624, %v660
      %v684 = vsel %vm669, %v625, %v662
      %v687 = vsel %vm669, %v626, %v664
      %v690 = vsel %vm669, %v627, %v666
      %v693 = vsel %vm669, %v628, %v668
      %v696 = vunpack.c.l.b16 %v367
      %v697 = vunpack.c.l.b16 %v368
      %v698 = vpack.c.b16 %v697, %v696
      %699 = vrot.lane.b32.xlu0 %v622, 64
      %v700 = vpop.permute.xlu0 %699
      %701 = vrot.lane.b32.xlu0 %v623, 64
      %v702 = vpop.permute.xlu0 %701
      %703 = vrot.lane.b32.xlu0 %v624, 64
      %v704 = vpop.permute.xlu0 %703
      %705 = vrot.lane.b32.xlu0 %v625, 64
      %v706 = vpop.permute.xlu0 %705
      %707 = vrot.lane.b32.xlu0 %v626, 64
      %v708 = vpop.permute.xlu0 %707
      %709 = vrot.lane.b32.xlu0 %v627, 64
      %v710 = vpop.permute.xlu0 %709
      %711 = vrot.lane.b32.xlu0 %v628, 64
      %v712 = vpop.permute.xlu0 %711
      %713 = vrot.lane.b32.xlu0 %v698, 64
      %v714 = vpop.permute.xlu0 %713
      %v715 = vunpack.c.l.b16 %v578
      %v716 = vunpack.c.l.b16 %v588
      %v717 = vpack.c.b16 %v716, %v715
      %718 = vrot.lane.b32.xlu0 %v646, 96
      %v719 = vpop.permute.xlu0 %718
      %720 = vrot.lane.b32.xlu0 %v647, 96
      %v721 = vpop.permute.xlu0 %720
      %722 = vrot.lane.b32.xlu0 %v648, 96
      %v723 = vpop.permute.xlu0 %722
      %724 = vrot.lane.b32.xlu0 %v649, 96
      %v725 = vpop.permute.xlu0 %724
      %726 = vrot.lane.b32.xlu0 %v650, 96
      %v727 = vpop.permute.xlu0 %726
      %728 = vrot.lane.b32.xlu0 %v651, 96
      %v729 = vpop.permute.xlu0 %728
      %730 = vrot.lane.b32.xlu0 %v652, 96
      %v731 = vpop.permute.xlu0 %730
      %732 = vrot.lane.b32.xlu0 %v717, 96
      %v733 = vpop.permute.xlu0 %732
      %vm734 = vcmask 523264
      %v736 = vsel %vm734, %v672, %v700
      %v738 = vsel %vm734, %v675, %v702
      %v740 = vsel %vm734, %v678, %v704
      %v742 = vsel %vm734, %v681, %v706
      %v744 = vsel %vm734, %v684, %v708
      %v746 = vsel %vm734, %v687, %v710
      %v748 = vsel %vm734, %v690, %v712
      %v750 = vsel %vm734, %v693, %v714
      %vm751 = vcmask 785408
      %v753 = vsel %vm751, %v736, %v719
      %v756 = vsel %vm751, %v738, %v721
      %v759 = vsel %vm751, %v740, %v723
      %v762 = vsel %vm751, %v742, %v725
      %v765 = vsel %vm751, %v744, %v727
      %v768 = vsel %vm751, %v746, %v729
      %v771 = vsel %vm751, %v748, %v731
      %v774 = vsel %vm751, %v750, %v733
      %v776 = vld [vmem:[%s4] sm:$0x1]
      %v777 = vld [vmem:[%s2] sm:$0xf]
      %v778 = vld [vmem:[%s2 + $0x4] sm:$0xf]
      %v779 = vld [vmem:[%s2 + $0x8] sm:$0xf]
      %v780 = vld [vmem:[%s2 + $0xc] sm:$0xf]
      %v781 = vld [vmem:[%s2 + $0x10] sm:$0xf]
      %v782 = vld [vmem:[%s2 + $0x14] sm:$0xf]
      %v783 = vld [vmem:[%s2 + $0x18] sm:$0xf]
      %v784 = vld [vmem:[%s2 + $0x1c] sm:$0xf]
      %v785 = vld [vmem:[%s3] sm:$0xf]
      %v786 = vld [vmem:[%s3 + $0x4] sm:$0xf]
      %v787 = vld [vmem:[%s3 + $0x8] sm:$0xf]
      %v788 = vld [vmem:[%s3 + $0xc] sm:$0xf]
      %v789 = vld [vmem:[%s3 + $0x10] sm:$0xf]
      %v790 = vld [vmem:[%s3 + $0x14] sm:$0xf]
      %v791 = vld [vmem:[%s3 + $0x18] sm:$0xf]
      %v792 = vld [vmem:[%s3 + $0x1c] sm:$0xf]
      %v793 = vld [vmem:[%s3 + $0x20] sm:$0xf]
      %v794 = vld [vmem:[%s3 + $0x24] sm:$0xf]
      %v795 = vld [vmem:[%s3 + $0x28] sm:$0xf]
      %v796 = vld [vmem:[%s3 + $0x2c] sm:$0xf]
      %v797 = vld [vmem:[%s3 + $0x30] sm:$0xf]
      %v798 = vld [vmem:[%s3 + $0x34] sm:$0xf]
      %v799 = vld [vmem:[%s3 + $0x38] sm:$0xf]
      %v800 = vld [vmem:[%s3 + $0x3c] sm:$0xf]
      %v802 = vperm.slane %v776, 0
      %v812 = vunpack.c.l.b16 %v777
      %v813 = vunpack.c.l.b16 %v778
      %v814 = vunpack.c.l.b16 %v779
      %v815 = vunpack.c.l.b16 %v780
      %v816 = vunpack.c.l.b16 %v781
      %v817 = vunpack.c.l.b16 %v782
      %v818 = vunpack.c.l.b16 %v783
      %v819 = vunpack.c.l.b16 %v784
      %v820 = vpack.c.b16 %v813, %v812
      %v821 = vpack.c.b16 %v815, %v814
      %v822 = vpack.c.b16 %v817, %v816
      %v823 = vpack.c.b16 %v819, %v818
      %v828 = vsel %vm734, %v672, 0
      %v830 = vsel %vm734, %v675, 0
      %v832 = vsel %vm734, %v678, 0
      %v834 = vsel %vm734, %v681, 0
      %v836 = vsel %vm734, %v684, 0
      %v838 = vsel %vm734, %v687, 0
      %v840 = vsel %vm734, %v690, 0
      %v842 = vsel %vm734, %v693, 0
      %844 = vmatpush.bf16.msra.mxu0 0
      %845 = vmatpush.bf16.msra.mxu0 0
      %846 = vmatpush.bf16.msra.mxu0 0
      %847 = vmatpush.bf16.msra.mxu0 0
      %848 = vmatpush.bf16.msra.mxu0 %v823
      %849 = vmatpush.bf16.msra.mxu0 %v822
      %850 = vmatpush.bf16.msra.mxu0 %v821
      %851 = vmatpush.bf16.msra.mxu0 %v820
      %852 = vmatmul.bf16.gmra.mxu0 %v828
      %v853 = vpop.f32.mrf.mxu0
      %v854 = vadd.f32 %v802, %v853
      %v855 = vpop.f32.mrf.mxu0
      %v856 = vadd.f32 %v802, %v855
      %857 = vmatmul.bf16.gmra.mxu0 %v830
      %v858 = vpop.f32.mrf.mxu0
      %v859 = vadd.f32 %v802, %v858
      %v860 = vpop.f32.mrf.mxu0
      %v861 = vadd.f32 %v802, %v860
      %862 = vmatmul.bf16.gmra.mxu0 %v832
      %v863 = vpop.f32.mrf.mxu0
      %v864 = vadd.f32 %v802, %v863
      %v865 = vpop.f32.mrf.mxu0
      %v866 = vadd.f32 %v802, %v865
      %867 = vmatmul.bf16.gmra.mxu0 %v834
      %v868 = vpop.f32.mrf.mxu0
      %v869 = vadd.f32 %v802, %v868
      %v870 = vpop.f32.mrf.mxu0
      %v871 = vadd.f32 %v802, %v870
      %872 = vmatmul.bf16.gmra.mxu0 %v836
      %v873 = vpop.f32.mrf.mxu0
      %v874 = vadd.f32 %v802, %v873
      %v875 = vpop.f32.mrf.mxu0
      %v876 = vadd.f32 %v802, %v875
      %877 = vmatmul.bf16.gmra.mxu0 %v838
      %v878 = vpop.f32.mrf.mxu0
      %v879 = vadd.f32 %v802, %v878
      %v880 = vpop.f32.mrf.mxu0
      %v881 = vadd.f32 %v802, %v880
      %882 = vmatmul.bf16.gmra.mxu0 %v840
      %v883 = vpop.f32.mrf.mxu0
      %v884 = vadd.f32 %v802, %v883
      %v885 = vpop.f32.mrf.mxu0
      %v886 = vadd.f32 %v802, %v885
      %887 = vmatmul.bf16.gmra.mxu0 %v842
      %v888 = vpop.f32.mrf.mxu0
      %v889 = vadd.f32 %v802, %v888
      %v890 = vpop.f32.mrf.mxu0
      %v891 = vadd.f32 %v802, %v890
      %892 = vdwg.mxu0
      %v893 = vmax.f32 %v854, 0.0
      %v894 = vmax.f32 %v856, 0.0
      %v895 = vmax.f32 %v859, 0.0
      %v896 = vmax.f32 %v861, 0.0
      %v897 = vmax.f32 %v864, 0.0
      %v898 = vmax.f32 %v866, 0.0
      %v899 = vmax.f32 %v869, 0.0
      %v900 = vmax.f32 %v871, 0.0
      %v901 = vmax.f32 %v874, 0.0
      %v902 = vmax.f32 %v876, 0.0
      %v903 = vmax.f32 %v879, 0.0
      %v904 = vmax.f32 %v881, 0.0
      %v905 = vmax.f32 %v884, 0.0
      %v906 = vmax.f32 %v886, 0.0
      %v907 = vmax.f32 %v889, 0.0
      %v908 = vmax.f32 %v891, 0.0
      %v909 = vmin.f32 %v893, 6.0
      %v910 = vmin.f32 %v894, 6.0
      %v911 = vmin.f32 %v895, 6.0
      %v912 = vmin.f32 %v896, 6.0
      %v913 = vmin.f32 %v897, 6.0
      %v914 = vmin.f32 %v898, 6.0
      %v915 = vmin.f32 %v899, 6.0
      %v916 = vmin.f32 %v900, 6.0
      %v917 = vmin.f32 %v901, 6.0
      %v918 = vmin.f32 %v902, 6.0
      %v919 = vmin.f32 %v903, 6.0
      %v920 = vmin.f32 %v904, 6.0
      %v921 = vmin.f32 %v905, 6.0
      %v922 = vmin.f32 %v906, 6.0
      %v923 = vmin.f32 %v907, 6.0
      %v924 = vmin.f32 %v908, 6.0
      %v941 = vunpack.c.l.b16 %v785
      %v942 = vunpack.c.l.b16 %v786
      %v943 = vunpack.c.l.b16 %v787
      %v944 = vunpack.c.l.b16 %v788
      %v945 = vunpack.c.l.b16 %v789
      %v946 = vunpack.c.l.b16 %v790
      %v947 = vunpack.c.l.b16 %v791
      %v948 = vunpack.c.l.b16 %v792
      %v949 = vunpack.c.l.b16 %v793
      %v950 = vunpack.c.l.b16 %v794
      %v951 = vunpack.c.l.b16 %v795
      %v952 = vunpack.c.l.b16 %v796
      %v953 = vunpack.c.l.b16 %v797
      %v954 = vunpack.c.l.b16 %v798
      %v955 = vunpack.c.l.b16 %v799
      %v956 = vunpack.c.l.b16 %v800
      %v957 = vpack.c.b16 %v942, %v941
      %v958 = vpack.c.b16 %v944, %v943
      %v959 = vpack.c.b16 %v946, %v945
      %v960 = vpack.c.b16 %v948, %v947
      %v961 = vpack.c.b16 %v950, %v949
      %v962 = vpack.c.b16 %v952, %v951
      %v963 = vpack.c.b16 %v954, %v953
      %v964 = vpack.c.b16 %v956, %v955
      %973 = vmatpush.bf16.msra.mxu0 %v964
      %974 = vmatpush.bf16.msra.mxu0 %v963
      %975 = vmatpush.bf16.msra.mxu0 %v962
      %976 = vmatpush.bf16.msra.mxu0 %v961
      %977 = vmatpush.bf16.msra.mxu0 %v960
      %978 = vmatpush.bf16.msra.mxu0 %v959
      %979 = vmatpush.bf16.msra.mxu0 %v958
      %980 = vmatpush.bf16.msra.mxu0 %v957
      %981 = vmatmul.bf16.gmra.mxu0 %v753
      %v982 = vpop.f32.mrf.mxu0
      %v983 = vadd.f32 %v802, %v982
      %v984 = vpop.f32.mrf.mxu0
      %v985 = vadd.f32 %v802, %v984
      %986 = vmatmul.bf16.gmra.mxu0 %v756
      %v987 = vpop.f32.mrf.mxu0
      %v988 = vadd.f32 %v802, %v987
      %v989 = vpop.f32.mrf.mxu0
      %v990 = vadd.f32 %v802, %v989
      %991 = vmatmul.bf16.gmra.mxu0 %v759
      %v992 = vpop.f32.mrf.mxu0
      %v993 = vadd.f32 %v802, %v992
      %v994 = vpop.f32.mrf.mxu0
      %v995 = vadd.f32 %v802, %v994
      %996 = vmatmul.bf16.gmra.mxu0 %v762
      %v997 = vpop.f32.mrf.mxu0
      %v998 = vadd.f32 %v802, %v997
      %v999 = vpop.f32.mrf.mxu0
      %v1000 = vadd.f32 %v802, %v999
      %1001 = vmatmul.bf16.gmra.mxu0 %v765
      %v1002 = vpop.f32.mrf.mxu0
      %v1003 = vadd.f32 %v802, %v1002
      %v1004 = vpop.f32.mrf.mxu0
      %v1005 = vadd.f32 %v802, %v1004
      %1006 = vmatmul.bf16.gmra.mxu0 %v768
      %v1007 = vpop.f32.mrf.mxu0
      %v1008 = vadd.f32 %v802, %v1007
      %v1009 = vpop.f32.mrf.mxu0
      %v1010 = vadd.f32 %v802, %v1009
      %1011 = vmatmul.bf16.gmra.mxu0 %v771
      %v1012 = vpop.f32.mrf.mxu0
      %v1013 = vadd.f32 %v802, %v1012
      %v1014 = vpop.f32.mrf.mxu0
      %v1015 = vadd.f32 %v802, %v1014
      %1016 = vmatmul.bf16.gmra.mxu0 %v774
      %v1017 = vpop.f32.mrf.mxu0
      %v1018 = vadd.f32 %v802, %v1017
      %v1019 = vpop.f32.mrf.mxu0
      %v1020 = vadd.f32 %v802, %v1019
      %1021 = vdwg.mxu0
      %v1022 = vmax.f32 %v983, 0.0
      %v1023 = vmax.f32 %v985, 0.0
      %v1024 = vmax.f32 %v988, 0.0
      %v1025 = vmax.f32 %v990, 0.0
      %v1026 = vmax.f32 %v993, 0.0
      %v1027 = vmax.f32 %v995, 0.0
      %v1028 = vmax.f32 %v998, 0.0
      %v1029 = vmax.f32 %v1000, 0.0
      %v1030 = vmax.f32 %v1003, 0.0
      %v1031 = vmax.f32 %v1005, 0.0
      %v1032 = vmax.f32 %v1008, 0.0
      %v1033 = vmax.f32 %v1010, 0.0
      %v1034 = vmax.f32 %v1013, 0.0
      %v1035 = vmax.f32 %v1015, 0.0
      %v1036 = vmax.f32 %v1018, 0.0
      %v1037 = vmax.f32 %v1020, 0.0
      %v1038 = vmin.f32 %v1022, 6.0
      %v1039 = vmin.f32 %v1023, 6.0
      %v1040 = vmin.f32 %v1024, 6.0
      %v1041 = vmin.f32 %v1025, 6.0
      %v1042 = vmin.f32 %v1026, 6.0
      %v1043 = vmin.f32 %v1027, 6.0
      %v1044 = vmin.f32 %v1028, 6.0
      %v1045 = vmin.f32 %v1029, 6.0
      %v1046 = vmin.f32 %v1030, 6.0
      %v1047 = vmin.f32 %v1031, 6.0
      %v1048 = vmin.f32 %v1032, 6.0
      %v1049 = vmin.f32 %v1033, 6.0
      %v1050 = vmin.f32 %v1034, 6.0
      %v1051 = vmin.f32 %v1035, 6.0
      %v1052 = vmin.f32 %v1036, 6.0
      %v1053 = vmin.f32 %v1037, 6.0
      %1054 = vst [vmem:[%s340] sm:$0xff] %v909
      %1055 = vst [vmem:[%s340 + $0x8] sm:$0xff] %v910
      %1056 = vst [vmem:[%s340 + $0x20] sm:$0xff] %v911
      %1057 = vst [vmem:[%s340 + $0x28] sm:$0xff] %v912
      %1058 = vst [vmem:[%s340 + $0x40] sm:$0xff] %v913
      %1059 = vst [vmem:[%s340 + $0x48] sm:$0xff] %v914
      %1060 = vst [vmem:[%s340 + $0x60] sm:$0xff] %v915
      %1061 = vst [vmem:[%s340 + $0x68] sm:$0xff] %v916
      %1062 = vst [vmem:[%s340 + $0x80] sm:$0xff] %v917
      %1063 = vst [vmem:[%s340 + $0x88] sm:$0xff] %v918
      %1064 = vst [vmem:[%s340 + $0xa0] sm:$0xff] %v919
      %1065 = vst [vmem:[%s340 + $0xa8] sm:$0xff] %v920
      %1066 = vst [vmem:[%s340 + $0xc0] sm:$0xff] %v921
      %1067 = vst [vmem:[%s340 + $0xc8] sm:$0xff] %v922
      %1068 = vst [vmem:[%s340 + $0xe0] sm:$0xff] %v923
      %1069 = vst [vmem:[%s340 + $0xe8] sm:$0xff] %v924
      %s1070 = scalar_lea.vmem %s340, 16
      %1071 = vst [vmem:[%s1070] sm:$0xff] %v1038
      %1072 = vst [vmem:[%s1070 + $0x8] sm:$0xff] %v1039
      %1073 = vst [vmem:[%s1070 + $0x20] sm:$0xff] %v1040
      %1074 = vst [vmem:[%s1070 + $0x28] sm:$0xff] %v1041
      %1075 = vst [vmem:[%s1070 + $0x40] sm:$0xff] %v1042
      %1076 = vst [vmem:[%s1070 + $0x48] sm:$0xff] %v1043
      %1077 = vst [vmem:[%s1070 + $0x60] sm:$0xff] %v1044
      %1078 = vst [vmem:[%s1070 + $0x68] sm:$0xff] %v1045
      %1079 = vst [vmem:[%s1070 + $0x80] sm:$0xff] %v1046
      %1080 = vst [vmem:[%s1070 + $0x88] sm:$0xff] %v1047
      %1081 = vst [vmem:[%s1070 + $0xa0] sm:$0xff] %v1048
      %1082 = vst [vmem:[%s1070 + $0xa8] sm:$0xff] %v1049
      %1083 = vst [vmem:[%s1070 + $0xc0] sm:$0xff] %v1050
      %1084 = vst [vmem:[%s1070 + $0xc8] sm:$0xff] %v1051
      %1085 = vst [vmem:[%s1070 + $0xe0] sm:$0xff] %v1052
      %1086 = vst [vmem:[%s1070 + $0xe8] sm:$0xff] %v1053
      %s1087 = smul.u32 8, %s21
      %p1088 = scmp.lt.s32.totalorder %s20, 1
      %s1089 = scalar_select %p1088, %s20, 1
      %p1090 = scmp.lt.s32.totalorder %s1087, 15
      %s1091 = scalar_select %p1090, %s1087, 15
      %s1092 = smul.addr %s1091, 4
      %s1093 = smul.addr %s1089, 64
      %s1094 = sadd.s32 %s1092, %s1093
      %s1095 = smul.addr %s1094, 8
      %s1096 = scalar_lea.vmem %s5, %s1095
      // Predicated region
      $region41: #{upsample_forward.1} parent=39 // pred_check
        %p1097 = pneg %p171
      $region42: #{upsample_forward.1} parent=39 // pred_check_branch
        %1099 = sbr.rel (%p1097) target = $region44
      $region43: #{upsample_forward.1} parent=39 // pred_region
        %s1100 = smul.u32 8, %s21
      $region44: #{upsample_forward.1} parent=39 // pred_fallthru
        _
    $region40: #{upsample_forward.1} parent=5 // pred_fallthru
      _
    %p1101 = scmp.le.s32.totalorder 2, %s11
    // Predicated region
    $region45: #{upsample_forward.1} parent=5 // pred_check
      %p1102 = pneg %p1101
    $region46: #{upsample_forward.1} parent=5 // pred_check_branch
      %1104 = sbr.rel (%p1102) target = $region48
    $region47: #{upsample_forward.1} parent=5 // pred_region
      %s1105 = ssub.s32 %s11, 2
      // Predicated region
      $region49: #{upsample_forward.1} parent=47 // pred_check
        %p1106 = pneg %p177
      $region50: #{upsample_forward.1} parent=47 // pred_check_branch
        %1108 = sbr.rel (%p1106) target = $region52
      $region51: #{upsample_forward.1} parent=47 // pred_region
        %s1109 = smul.u32 8, %s23
        %p1110 = scmp.lt.s32.totalorder %s22, 1
        %s1111 = scalar_select %p1110, %s22, 1
        %p1112 = scmp.lt.s32.totalorder %s1109, 15
        %s1113 = scalar_select %p1112, %s1109, 15
        %s1114 = smul.addr %s1113, 4
        %s1115 = smul.addr %s1111, 64
        %s1116 = sadd.s32 %s1114, %s1115
        %s1117 = smul.addr %s1116, 8
        %s1118 = scalar_lea.vmem %s5, %s1117
      $region52: #{upsample_forward.1} parent=47 // pred_fallthru
        _
    $region48: #{upsample_forward.1} parent=5 // pred_fallthru
      _
  $region6: #{upsample_forward.1} parent=0 // loop_footer
    %s15 = sadd.s32 1, %s11
  $region7: #{upsample_forward.1} parent=0 // loop_footer_branch
    %10 = sbr.rel target = $region3
  $region8: #{upsample_forward.1} parent=0 // loop_exit
    _

</llo_original>
